<compile_context>
chip_gen: v7x
topology: tpu7x:2x2x1
jax: 0.10.0
libtpu: 0.0.40
codegen_flags: <defaults>
</compile_context>

<pallas_src>
import jax
import jax.numpy as jnp
from jax.experimental import pallas as pl
from jax.experimental.pallas import tpu as pltpu

ALPHA = 3.85     # batch-weighting sharpness from the PyTorch module
TOP_K = 50       # number of top / bottom genes per row
COS_EPS = 1e-8   # torch.nn.CosineSimilarity default eps


def _hybrid_loss_kernel(pred_ref, true_ref, t_top_ref, t_bot_ref, out_ref):
    pred = pred_ref[...].astype(jnp.float32)      # (B, G)
    true = true_ref[...].astype(jnp.float32)      # (B, G)
    t_top = t_top_ref[...].astype(jnp.float32)    # (B, 1)  k-th largest value of each row
    t_bot = t_bot_ref[...].astype(jnp.float32)    # (B, 1)  k-th smallest value of each row

    B, G = pred.shape
    inv_b = 1.0 / float(B)
    inv_bg = 1.0 / float(B * G)

    # ---- list-wise cosine term:  mean_b (1 - cos_b) / 0.5 ----
    dot = jnp.sum(pred * true, axis=-1, keepdims=True)                         # (B, 1)
    nrm = (jnp.sqrt(jnp.sum(pred * pred, axis=-1, keepdims=True)) *
           jnp.sqrt(jnp.sum(true * true, axis=-1, keepdims=True)))             # (B, 1)
    cos = dot / jnp.maximum(nrm, COS_EPS)
    loss_cos = jnp.sum(2.0 * (1.0 - cos)) * inv_b

    # ---- batch-weighted MSE term ----
    diff = pred - true
    sq = diff * diff                                                           # (B, G)

    # Membership of each gene in its row's top-k / bottom-k, via the per-row
    # k-th-value thresholds (equivalent to argsort[:, :k] for distinct values).
    in_top = (true >= t_top).astype(jnp.float32)                               # (B, G)
    in_bot = (true <= t_bot).astype(jnp.float32)                               # (B, G)

    # Cross-batch occurrence counts per gene (the Counter in the PyTorch code).
    cnt_top = jnp.sum(in_top, axis=0, keepdims=True)                           # (1, G)
    cnt_bot = jnp.sum(in_bot, axis=0, keepdims=True)                           # (1, G)

    # coef[g] = alpha / (1 + exp(cnt[g])) for genes that appear, else 0.
    # exp + approx reciprocal both live on the EUP slot; O(G) work only.
    coef_top = jnp.where(
        cnt_top > 0.0,
        ALPHA * pl.reciprocal(1.0 + jnp.exp(cnt_top), approx=True),
        0.0)
    coef_bot = jnp.where(
        cnt_bot > 0.0,
        ALPHA * pl.reciprocal(1.0 + jnp.exp(cnt_bot), approx=True),
        0.0)

    top_mse = jnp.sum(sq * coef_top) * inv_bg
    bot_mse = jnp.sum(sq * coef_bot) * inv_bg
    loss_mse = 0.5 * (top_mse + bot_mse)

    out_ref[...] = jnp.broadcast_to(loss_cos + loss_mse, (1, 1))


def hybrid_cosine_mse_batchweighted_loss(pred, true):
    """pred, true: (batch, genes) float arrays. Returns scalar float32 loss."""
    pred = pred.astype(jnp.float32)
    true = true.astype(jnp.float32)
    B, G = pred.shape
    k = min(TOP_K, G)

    # TODO(synk): the per-row k-th order statistic requires a sort / top_k, which
    # has no clean TPU Pallas primitive; this O(B*G log G) glue stays in XLA and
    # only (B, 1) thresholds enter the kernel.  (Exact tie-breaking at the k-th
    # value differs from torch.argsort, irrelevant for continuous inputs.)
    top_vals = jax.lax.top_k(true, k)[0]          # (B, k), descending
    bot_vals = jax.lax.top_k(-true, k)[0]         # (B, k), descending of negation
    t_top = top_vals[:, k - 1:k]                  # (B, 1) k-th largest per row
    t_bot = -bot_vals[:, k - 1:k]                 # (B, 1) k-th smallest per row

    # Advisory cost hint: elementwise-dominated, a handful of exps/recips.
    cost = pl.CostEstimate(
        flops=12 * B * G,
        transcendentals=4 * G,
        bytes_accessed=4 * (2 * B * G + 2 * B + 1),
    )

    # Grid-less single-tile call: the cross-batch gene counts couple the whole
    # batch in one pass, and the footprint (a few (B, G) f32 tiles, ~4 KB per
    # row) fits VMEM comfortably on v5e/v6e/v7x for realistic batch sizes.
    out = pl.pallas_call(
        _hybrid_loss_kernel,
        out_shape=jax.ShapeDtypeStruct((1, 1), jnp.float32),
        in_specs=[
            pl.BlockSpec(memory_space=pltpu.MemorySpace.VMEM),
            pl.BlockSpec(memory_space=pltpu.MemorySpace.VMEM),
            pl.BlockSpec(memory_space=pltpu.MemorySpace.VMEM),
            pl.BlockSpec(memory_space=pltpu.MemorySpace.VMEM),
        ],
        out_specs=pl.BlockSpec(memory_space=pltpu.MemorySpace.VMEM),
        cost_estimate=cost,
    )(pred, true, t_top, t_bot)
    return out[0, 0]


def _reference_loss(pred, true):
    """Pure-JAX replica of the PyTorch forward (argsort + Counter path)."""
    B, G = pred.shape
    k = min(TOP_K, G)

    dot = jnp.sum(pred * true, axis=-1)
    nrm = jnp.linalg.norm(pred, axis=-1) * jnp.linalg.norm(true, axis=-1)
    cos = dot / jnp.maximum(nrm, COS_EPS)
    loss1 = jnp.mean((1.0 - cos) / 0.5)

    sq = (pred - true) ** 2
    top_idx = jnp.argsort(-true, axis=-1)[:, :k]
    bot_idx = jnp.argsort(true, axis=-1)[:, :k]
    cnt_top = jnp.zeros((G,), jnp.float32).at[top_idx.reshape(-1)].add(1.0)
    cnt_bot = jnp.zeros((G,), jnp.float32).at[bot_idx.reshape(-1)].add(1.0)
    coef_top = jnp.where(cnt_top > 0, ALPHA / (1.0 + jnp.exp(cnt_top)), 0.0)
    coef_bot = jnp.where(cnt_bot > 0, ALPHA / (1.0 + jnp.exp(cnt_bot)), 0.0)
    top_mse = jnp.mean(sq * coef_top[None, :])
    bot_mse = jnp.mean(sq * coef_bot[None, :])
    return loss1 + 0.5 * (top_mse + bot_mse)


if __name__ == "__main__":
    key = jax.random.PRNGKey(0)
    k_pred, k_true = jax.random.split(key)

    B, G = 4, 978  # 978 landmark genes, as hard-coded in the PyTorch module
    pred = jax.random.normal(k_pred, (B, G), dtype=jnp.float32)   # predicted expression
    true = jax.random.normal(k_true, (B, G), dtype=jnp.float32)   # measured expression

    loss = jax.jit(hybrid_cosine_mse_batchweighted_loss)(pred, true)
    jax.block_until_ready(loss)

    ref = _reference_loss(pred, true)
    assert loss.shape == () and loss.dtype == jnp.float32
    assert bool(jnp.isfinite(loss))
    assert bool(jnp.allclose(loss, ref, rtol=2e-3, atol=2e-3)), (loss, ref)
    print("KERNEL_OK")
</pallas_src>

<mosaic_0001>
module attributes {stable_mosaic.version = 11 : i64} {
  func.func @_hybrid_loss_kernel(%arg0: memref<4x978xf32, #tpu.memory_space<vmem>>, %arg1: memref<4x978xf32, #tpu.memory_space<vmem>>, %arg2: memref<4x1xf32, #tpu.memory_space<vmem>>, %arg3: memref<4x1xf32, #tpu.memory_space<vmem>>, %arg4: memref<1x1xf32, #tpu.memory_space<vmem>>) attributes {dimension_semantics = [], scalar_prefetch = 0 : i64, scratch_operands = 0 : i64, tpu.core_type = #tpu.core_type<tc>} {
    %c0 = arith.constant 0 : index
    %c0_0 = arith.constant 0 : index
    %0 = vector.load %arg0[%c0, %c0_0] : memref<4x978xf32, #tpu.memory_space<vmem>>, vector<4x978xf32>
    %c0_1 = arith.constant 0 : index
    %c0_2 = arith.constant 0 : index
    %1 = vector.load %arg1[%c0_1, %c0_2] : memref<4x978xf32, #tpu.memory_space<vmem>>, vector<4x978xf32>
    %c0_3 = arith.constant 0 : index
    %c0_4 = arith.constant 0 : index
    %2 = vector.load %arg2[%c0_3, %c0_4] : memref<4x1xf32, #tpu.memory_space<vmem>>, vector<4x1xf32>
    %c0_5 = arith.constant 0 : index
    %c0_6 = arith.constant 0 : index
    %3 = vector.load %arg3[%c0_5, %c0_6] : memref<4x1xf32, #tpu.memory_space<vmem>>, vector<4x1xf32>
    %4 = arith.mulf %0, %1 : vector<4x978xf32>
    %cst = arith.constant dense<0.000000e+00> : vector<4xf32>
    %5 = vector.multi_reduction <add>, %4, %cst [1] : vector<4x978xf32> to vector<4xf32>
    %6 = vector.shape_cast %5 : vector<4xf32> to vector<4x1xf32>
    %7 = arith.mulf %0, %0 : vector<4x978xf32>
    %cst_7 = arith.constant dense<0.000000e+00> : vector<4xf32>
    %8 = vector.multi_reduction <add>, %7, %cst_7 [1] : vector<4x978xf32> to vector<4xf32>
    %9 = vector.shape_cast %8 : vector<4xf32> to vector<4x1xf32>
    %10 = math.sqrt %9 : vector<4x1xf32>
    %11 = arith.mulf %1, %1 : vector<4x978xf32>
    %cst_8 = arith.constant dense<0.000000e+00> : vector<4xf32>
    %12 = vector.multi_reduction <add>, %11, %cst_8 [1] : vector<4x978xf32> to vector<4xf32>
    %13 = vector.shape_cast %12 : vector<4xf32> to vector<4x1xf32>
    %14 = math.sqrt %13 : vector<4x1xf32>
    %15 = arith.mulf %10, %14 : vector<4x1xf32>
    %cst_9 = arith.constant 9.99999993E-9 : f32
    %16 = vector.broadcast %cst_9 : f32 to vector<4x1xf32>
    %17 = arith.maximumf %15, %16 : vector<4x1xf32>
    %18 = arith.divf %6, %17 : vector<4x1xf32>
    %cst_10 = arith.constant 1.000000e+00 : f32
    %19 = vector.broadcast %cst_10 : f32 to vector<4x1xf32>
    %20 = arith.subf %19, %18 : vector<4x1xf32>
    %cst_11 = arith.constant 2.000000e+00 : f32
    %21 = vector.broadcast %cst_11 : f32 to vector<4x1xf32>
    %22 = arith.mulf %21, %20 : vector<4x1xf32>
    %23 = vector.shape_cast %22 : vector<4x1xf32> to vector<1x4x1xf32>
    %cst_12 = arith.constant dense<0.000000e+00> : vector<1xf32>
    %24 = vector.multi_reduction <add>, %23, %cst_12 [1, 2] : vector<1x4x1xf32> to vector<1xf32>
    %25 = vector.shape_cast %24 : vector<1xf32> to vector<1x1x1xf32>
    %26 = vector.extract %25[0, 0, 0] : f32 from vector<1x1x1xf32>
    %cst_13 = arith.constant 2.500000e-01 : f32
    %27 = arith.mulf %26, %cst_13 : f32
    %28 = arith.subf %0, %1 : vector<4x978xf32>
    %29 = arith.mulf %28, %28 : vector<4x978xf32>
    %30 = vector.broadcast %2 : vector<4x1xf32> to vector<4x978xf32>
    %31 = arith.cmpf oge, %1, %30 : vector<4x978xf32>
    %32 = arith.extui %31 : vector<4x978xi1> to vector<4x978xi32>
    %33 = arith.sitofp %32 : vector<4x978xi32> to vector<4x978xf32>
    %34 = vector.broadcast %3 : vector<4x1xf32> to vector<4x978xf32>
    %35 = arith.cmpf ole, %1, %34 : vector<4x978xf32>
    %36 = arith.extui %35 : vector<4x978xi1> to vector<4x978xi32>
    %37 = arith.sitofp %36 : vector<4x978xi32> to vector<4x978xf32>
    %cst_14 = arith.constant dense<0.000000e+00> : vector<978xf32>
    %38 = vector.multi_reduction <add>, %33, %cst_14 [0] : vector<4x978xf32> to vector<978xf32>
    %39 = vector.shape_cast %38 : vector<978xf32> to vector<1x978xf32>
    %cst_15 = arith.constant dense<0.000000e+00> : vector<978xf32>
    %40 = vector.multi_reduction <add>, %37, %cst_15 [0] : vector<4x978xf32> to vector<978xf32>
    %41 = vector.shape_cast %40 : vector<978xf32> to vector<1x978xf32>
    %cst_16 = arith.constant 0.000000e+00 : f32
    %42 = vector.broadcast %cst_16 : f32 to vector<1x978xf32>
    %43 = arith.cmpf ogt, %39, %42 : vector<1x978xf32>
    %44 = math.exp %39 : vector<1x978xf32>
    %cst_17 = arith.constant 1.000000e+00 : f32
    %45 = vector.broadcast %cst_17 : f32 to vector<1x978xf32>
    %46 = arith.addf %45, %44 : vector<1x978xf32>
    %47 = tpu.reciprocal %46 {approx = true} : vector<1x978xf32> -> vector<1x978xf32>
    %cst_18 = arith.constant 3.850000e+00 : f32
    %48 = vector.broadcast %cst_18 : f32 to vector<1x978xf32>
    %49 = arith.mulf %48, %47 : vector<1x978xf32>
    %cst_19 = arith.constant 0.000000e+00 : f32
    %50 = vector.broadcast %cst_19 : f32 to vector<1x978xf32>
    %51 = arith.select %43, %49, %50 : vector<1x978xi1>, vector<1x978xf32>
    %cst_20 = arith.constant 0.000000e+00 : f32
    %52 = vector.broadcast %cst_20 : f32 to vector<1x978xf32>
    %53 = arith.cmpf ogt, %41, %52 : vector<1x978xf32>
    %54 = math.exp %41 : vector<1x978xf32>
    %cst_21 = arith.constant 1.000000e+00 : f32
    %55 = vector.broadcast %cst_21 : f32 to vector<1x978xf32>
    %56 = arith.addf %55, %54 : vector<1x978xf32>
    %57 = tpu.reciprocal %56 {approx = true} : vector<1x978xf32> -> vector<1x978xf32>
    %cst_22 = arith.constant 3.850000e+00 : f32
    %58 = vector.broadcast %cst_22 : f32 to vector<1x978xf32>
    %59 = arith.mulf %58, %57 : vector<1x978xf32>
    %cst_23 = arith.constant 0.000000e+00 : f32
    %60 = vector.broadcast %cst_23 : f32 to vector<1x978xf32>
    %61 = arith.select %53, %59, %60 : vector<1x978xi1>, vector<1x978xf32>
    %62 = vector.broadcast %51 : vector<1x978xf32> to vector<4x978xf32>
    %63 = arith.mulf %29, %62 : vector<4x978xf32>
    %64 = vector.shape_cast %63 : vector<4x978xf32> to vector<1x4x978xf32>
    %cst_24 = arith.constant dense<0.000000e+00> : vector<1xf32>
    %65 = vector.multi_reduction <add>, %64, %cst_24 [1, 2] : vector<1x4x978xf32> to vector<1xf32>
    %66 = vector.shape_cast %65 : vector<1xf32> to vector<1x1x1xf32>
    %67 = vector.extract %66[0, 0, 0] : f32 from vector<1x1x1xf32>
    %cst_25 = arith.constant 2.55623716E-4 : f32
    %68 = arith.mulf %67, %cst_25 : f32
    %69 = vector.broadcast %61 : vector<1x978xf32> to vector<4x978xf32>
    %70 = arith.mulf %29, %69 : vector<4x978xf32>
    %71 = vector.shape_cast %70 : vector<4x978xf32> to vector<1x4x978xf32>
    %cst_26 = arith.constant dense<0.000000e+00> : vector<1xf32>
    %72 = vector.multi_reduction <add>, %71, %cst_26 [1, 2] : vector<1x4x978xf32> to vector<1xf32>
    %73 = vector.shape_cast %72 : vector<1xf32> to vector<1x1x1xf32>
    %74 = vector.extract %73[0, 0, 0] : f32 from vector<1x1x1xf32>
    %cst_27 = arith.constant 2.55623716E-4 : f32
    %75 = arith.mulf %74, %cst_27 : f32
    %76 = arith.addf %68, %75 : f32
    %cst_28 = arith.constant 5.000000e-01 : f32
    %77 = arith.mulf %cst_28, %76 : f32
    %78 = arith.addf %27, %77 : f32
    %79 = vector.broadcast %78 : f32 to vector<1x1xf32>
    %c0_29 = arith.constant 0 : index
    %c0_30 = arith.constant 0 : index
    %80 = vector.load %arg4[%c0_29, %c0_30] : memref<1x1xf32, #tpu.memory_space<vmem>>, vector<1x1xf32>
    tpu.vector_store %arg4[%c0_29, %c0_30], %79 {strides = array<i32>} : memref<1x1xf32, #tpu.memory_space<vmem>>, vector<1x1xf32>,
    return
  }
}

</mosaic_0001>

<llo_original>
// kernel: neg.2
$region0: #{neg.2}
  #allocation2 [shape = 's32[1]{0}', space=sflag, size = 0x4, scoped, tag = 'scoped memory for neg.2']
  %s0 = inlined_call_operand.hbm [shape: f32[4,978], index: 0, kind: input, shape index: {}]
  %s1 = inlined_call_operand.vmem [shape: f32[4,978], index: 1, kind: output, shape index: {}]
  $region1: #{neg.2} parent=0
    #allocation0 [shape = 'u8[16384]{0}', space=vmem, size = 0x4000, scoped, tag = 'operand span for operand 0']
    #allocation1 [shape = 's32[1]{0}', space=sflag, size = 0x4, scoped, tag = 'scoped memory for neg.2']
    %2 = vsyncpa [#allocation1], 0
    %s4 = ssub.s32 512, 512
    %5 = vsyncadd [#allocation1], %s4
    %s7 = sshll.u32 [#allocation0], 4
    %s8 = int_to_ptr.vmem [resolvable:$true] %s7
    %10 = dma.hbm_to_vmem [thread:$0]  %s0, 512, %s8, [#allocation1]
    %11 = dma.done [#allocation1], 512
    %v12 = vld [vmem:[#allocation0] sm:$0xf]
    %13 = xla_tuple %v12
    %14 = xla_tuple %13
    %v15 = vxor.u32 %v12, 2147483648
    %16 = xla_tuple %v15
    %17 = vst [vmem:[%s1] sm:$0xf] %v15
    %s18 = scalar_lea.vmem [#allocation0], 4
    %v19 = vld [vmem:[%s18] sm:$0xf]
    %20 = xla_tuple %v19
    %21 = xla_tuple %20
    %v22 = vxor.u32 %v19, 2147483648
    %23 = xla_tuple %v22
    %s24 = scalar_lea.vmem %s1, 4
    %25 = vst [vmem:[%s24] sm:$0xf] %v22
    %s26 = scalar_lea.vmem [#allocation0], 8
    %v27 = vld [vmem:[%s26] sm:$0xf]
    %28 = xla_tuple %v27
    %29 = xla_tuple %28
    %v30 = vxor.u32 %v27, 2147483648
    %31 = xla_tuple %v30
    %s32 = scalar_lea.vmem %s1, 8
    %33 = vst [vmem:[%s32] sm:$0xf] %v30
    %s34 = scalar_lea.vmem [#allocation0], 12
    %v35 = vld [vmem:[%s34] sm:$0xf]
    %36 = xla_tuple %v35
    %37 = xla_tuple %36
    %v38 = vxor.u32 %v35, 2147483648
    %39 = xla_tuple %v38
    %s40 = scalar_lea.vmem %s1, 12
    %41 = vst [vmem:[%s40] sm:$0xf] %v38
    %s42 = scalar_lea.vmem [#allocation0], 16
    %v43 = vld [vmem:[%s42] sm:$0xf]
    %44 = xla_tuple %v43
    %45 = xla_tuple %44
    %v46 = vxor.u32 %v43, 2147483648
    %47 = xla_tuple %v46
    %s48 = scalar_lea.vmem %s1, 16
    %49 = vst [vmem:[%s48] sm:$0xf] %v46
    %s50 = scalar_lea.vmem [#allocation0], 20
    %v51 = vld [vmem:[%s50] sm:$0xf]
    %52 = xla_tuple %v51
    %53 = xla_tuple %52
    %v54 = vxor.u32 %v51, 2147483648
    %55 = xla_tuple %v54
    %s56 = scalar_lea.vmem %s1, 20
    %57 = vst [vmem:[%s56] sm:$0xf] %v54
    %s58 = scalar_lea.vmem [#allocation0], 24
    %v59 = vld [vmem:[%s58] sm:$0xf]
    %60 = xla_tuple %v59
    %61 = xla_tuple %60
    %v62 = vxor.u32 %v59, 2147483648
    %63 = xla_tuple %v62
    %s64 = scalar_lea.vmem %s1, 24
    %65 = vst [vmem:[%s64] sm:$0xf] %v62
    %s66 = scalar_lea.vmem [#allocation0], 28
    %v67 = vld [vmem:[%s66] sm:$0xf]
    %68 = xla_tuple %v67
    %69 = xla_tuple %68
    %v70 = vxor.u32 %v67, 2147483648
    %71 = xla_tuple %v70
    %s72 = scalar_lea.vmem %s1, 28
    %73 = vst [vmem:[%s72] sm:$0xf] %v70
    %74 = vsyncpa [#allocation1], 1

// kernel: hybrid_cosine_mse_batchweighted_loss.1
$region0: #{hybrid_cosine_mse_batchweighted_loss.1}
  #allocation0 [shape = 'u32[]', space=smem, size = 0x4, offset = 0x4, fixed_abs, tag = 'smem constant byte address 0x4 - core index']
  #allocation1 [shape = 'u32[144,128]{1,0:T(1,128)}', space=vmem, size = 0x12000, scoped, tag = 'internal scratch']
  %s0 = inlined_call_operand.vmem [shape: f32[4,978], index: 0, kind: input, shape index: {}]
  %s1 = inlined_call_operand.vmem [shape: f32[4,978], index: 1, kind: input, shape index: {}]
  %s2 = inlined_call_operand.vmem [shape: f32[4,1], index: 2, kind: input, shape index: {}]
  %s3 = inlined_call_operand.vmem [shape: f32[4,1], index: 3, kind: input, shape index: {}]
  %s4 = inlined_call_operand.hbm [shape: f32[1,1], index: 4, kind: output, shape index: {}]
  %s5 = sld [smem:[#allocation0]]
  $region26: #{hybrid_cosine_mse_batchweighted_loss.1} parent=0
    _
  %s7 = ssub.s32 1, %s5
  %s8 = scalar_select 0, %s7, %s5
  $region1: #{hybrid_cosine_mse_batchweighted_loss.1} parent=0
    #allocation2 [shape = 'u8[512]{0}', space=vmem, size = 0x400, scoped, tag = 'output window, operand 0, single buffered']
    #allocation3 [shape = 's32[1]{0}', space=sflag, size = 0x4, scoped, tag = 'scoped memory for hybrid_cosine_mse_batchweighted_loss.1']
    %9 = vsyncpa [#allocation3], 0
    // Predicated region
    $region2: #{hybrid_cosine_mse_batchweighted_loss.1} parent=1 // pred_check
      _
    $region3: #{hybrid_cosine_mse_batchweighted_loss.1} parent=1 // pred_check_branch
      %11 = sbr.rel (0) target = $region5
    $region4: #{hybrid_cosine_mse_batchweighted_loss.1} parent=1 // pred_region
      _
    $region5: #{hybrid_cosine_mse_batchweighted_loss.1} parent=1 // pred_fallthru
      _
    // Predicated region
    $region6: #{hybrid_cosine_mse_batchweighted_loss.1} parent=1 // pred_check
      _
    $region7: #{hybrid_cosine_mse_batchweighted_loss.1} parent=1 // pred_check_branch
      %13 = sbr.rel (0) target = $region9
    $region8: #{hybrid_cosine_mse_batchweighted_loss.1} parent=1 // pred_region
      _
    $region9: #{hybrid_cosine_mse_batchweighted_loss.1} parent=1 // pred_fallthru
      _
    // Predicated region
    $region10: #{hybrid_cosine_mse_batchweighted_loss.1} parent=1 // pred_check
      _
    $region11: #{hybrid_cosine_mse_batchweighted_loss.1} parent=1 // pred_check_branch
      %15 = sbr.rel (0) target = $region13
    $region12: #{hybrid_cosine_mse_batchweighted_loss.1} parent=1 // pred_region
      _
    $region13: #{hybrid_cosine_mse_batchweighted_loss.1} parent=1 // pred_fallthru
      _
    // Predicated region
    $region14: #{hybrid_cosine_mse_batchweighted_loss.1} parent=1 // pred_check
      _
    $region15: #{hybrid_cosine_mse_batchweighted_loss.1} parent=1 // pred_check_branch
      %17 = sbr.rel (0) target = $region17
    $region16: #{hybrid_cosine_mse_batchweighted_loss.1} parent=1 // pred_region
      _
    $region17: #{hybrid_cosine_mse_batchweighted_loss.1} parent=1 // pred_fallthru
      _
    %v18 = vld [vmem:[%s0] sm:$0xff]
    %v19 = vld [vmem:[%s0 + $0x8] sm:$0xff]
    %v20 = vld [vmem:[%s0 + $0x10] sm:$0xff]
    %v21 = vld [vmem:[%s0 + $0x18] sm:$0xff]
    %v22 = vld [vmem:[%s1] sm:$0xff]
    %v23 = vld [vmem:[%s1 + $0x8] sm:$0xff]
    %v24 = vld [vmem:[%s1 + $0x10] sm:$0xff]
    %v25 = vld [vmem:[%s1 + $0x18] sm:$0xff]
    %v26 = vld [vmem:[%s2] sm:$0xf]
    %v27 = vld [vmem:[%s3] sm:$0xf]
    %v28 = vmul.f32 %v18, %v22
    %v29 = vmul.f32 %v19, %v23
    %v30 = vmul.f32 %v20, %v24
    %v31 = vmul.f32 %v21, %v25
    %v36 = vcombine.high %v28, %v28
    %v37 = vcombine.high %v29, %v29
    %v38 = vcombine.high %v30, %v30
    %v39 = vcombine.high %v31, %v31
    %vm44 = vcmask 1043456
    %v45 = vsel %vm44, %v28, 0.0
    %v46 = vsel %vm44, %v36, 0.0
    %v47 = vadd.f32 %v45, %v46
    %v48 = vsel %vm44, %v29, 0.0
    %v49 = vadd.f32 %v47, %v48
    %v50 = vsel %vm44, %v37, 0.0
    %v51 = vadd.f32 %v49, %v50
    %v52 = vsel %vm44, %v30, 0.0
    %v53 = vadd.f32 %v51, %v52
    %v54 = vsel %vm44, %v38, 0.0
    %v55 = vadd.f32 %v53, %v54
    %v56 = vsel %vm44, %v31, 0.0
    %v57 = vadd.f32 %v55, %v56
    %vm58 = vcmask 666624
    %v59 = vsel %vm58, %v39, 0.0
    %v60 = vadd.f32 %v57, %v59
    %61 = vadd.xlane.f32.xlu0 %v60
    %v62 = vpop.xlane.xlu0 %61
    %v63 = vmul.f32 %v18, %v18
    %v64 = vmul.f32 %v19, %v19
    %v65 = vmul.f32 %v20, %v20
    %v66 = vmul.f32 %v21, %v21
    %v71 = vcombine.high %v63, %v63
    %v72 = vcombine.high %v64, %v64
    %v73 = vcombine.high %v65, %v65
    %v74 = vcombine.high %v66, %v66
    %v79 = vsel %vm44, %v63, 0.0
    %v80 = vsel %vm44, %v71, 0.0
    %v81 = vadd.f32 %v79, %v80
    %v82 = vsel %vm44, %v64, 0.0
    %v83 = vadd.f32 %v81, %v82
    %v84 = vsel %vm44, %v72, 0.0
    %v85 = vadd.f32 %v83, %v84
    %v86 = vsel %vm44, %v65, 0.0
    %v87 = vadd.f32 %v85, %v86
    %v88 = vsel %vm44, %v73, 0.0
    %v89 = vadd.f32 %v87, %v88
    %v90 = vsel %vm44, %v66, 0.0
    %v91 = vadd.f32 %v89, %v90
    %v92 = vsel %vm58, %v74, 0.0
    %v93 = vadd.f32 %v91, %v92
    %94 = vadd.xlane.f32.xlu0 %v93
    %v95 = vpop.xlane.xlu0 %94
    %v96 = vrsqrt.pop %v95
    %v97 = vmul.f32 %v95, %v96
    %vm98 = vcmp.eq.f32.partialorder %v95, inf
    %v99 = vsel %vm98, %v95, %v97
    %vm100 = vcmp.eq.f32.partialorder %v95, 0.0
    %v101 = vand.u32 %v95, 2147483648
    %v102 = vsel %vm100, %v101, %v99
    %v103 = vmul.f32 %v22, %v22
    %v104 = vmul.f32 %v23, %v23
    %v105 = vmul.f32 %v24, %v24
    %v106 = vmul.f32 %v25, %v25
    %v111 = vcombine.high %v103, %v103
    %v112 = vcombine.high %v104, %v104
    %v113 = vcombine.high %v105, %v105
    %v114 = vcombine.high %v106, %v106
    %v119 = vsel %vm44, %v103, 0.0
    %v120 = vsel %vm44, %v111, 0.0
    %v121 = vadd.f32 %v119, %v120
    %v122 = vsel %vm44, %v104, 0.0
    %v123 = vadd.f32 %v121, %v122
    %v124 = vsel %vm44, %v112, 0.0
    %v125 = vadd.f32 %v123, %v124
    %v126 = vsel %vm44, %v105, 0.0
    %v127 = vadd.f32 %v125, %v126
    %v128 = vsel %vm44, %v113, 0.0
    %v129 = vadd.f32 %v127, %v128
    %v130 = vsel %vm44, %v106, 0.0
    %v131 = vadd.f32 %v129, %v130
    %v132 = vsel %vm58, %v114, 0.0
    %v133 = vadd.f32 %v131, %v132
    %134 = vadd.xlane.f32.xlu0 %v133
    %v135 = vpop.xlane.xlu0 %134
    %v136 = vrsqrt.pop %v135
    %v137 = vmul.f32 %v135, %v136
    %vm138 = vcmp.eq.f32.partialorder %v135, inf
    %v139 = vsel %vm138, %v135, %v137
    %vm140 = vcmp.eq.f32.partialorder %v135, 0.0
    %v141 = vand.u32 %v135, 2147483648
    %v142 = vsel %vm140, %v141, %v139
    %v143 = vmul.f32 %v102, %v142
    %v144 = vmax.f32 %v143, 1e-08
    %v145 = vrcp.pop %v144
    %v146 = vmul.f32 %v62, %v145
    %v147 = vsub.f32 1.0, %v146
    %v148 = vmul.f32 %v147, 2.0
    %vm149 = vcmask 3072
    %v150 = vsel %vm149, %v148, 0.0
    %151 = vadd.xlane.f32.xlu0 %v150
    %v152 = vpop.xlane.xlu0 %151
    %v153 = vrot.slane %v152, 4
    %v154 = vadd.f32 %v152, %v153
    %v155 = vrot.slane %v154, 2
    %v156 = vadd.f32 %v154, %v155
    %v157 = vrot.slane %v156, 1
    %v158 = vadd.f32 %v156, %v157
    %s159 = vtos %v158
    %s160 = smul.f32 %s159, 0.25
    %v161 = vsub.f32 %v18, %v22
    %v162 = vsub.f32 %v19, %v23
    %v163 = vsub.f32 %v20, %v24
    %v164 = vsub.f32 %v21, %v25
    %v165 = vmul.f32 %v161, %v161
    %v166 = vmul.f32 %v162, %v162
    %v167 = vmul.f32 %v163, %v163
    %v168 = vmul.f32 %v164, %v164
    %170 = vset.pattern.permute.xlu0 0
    %171 = vperm.xlu0 %170, %v26
    %v172 = vpop.permute.xlu0 %171
    %v174 = vunpack.c.l.s4 839922192
    %v175 = vunpack.c.0.s8 %v174
    %v176 = vlaneseq
    %v177 = vshrl.u32 %v176, 7
    %v178 = vsub.s32 %v175, %v177
    %v179 = vrot.slane %v172, %v178
    %vm181 = vcmp.ge.f32.partialorder %v22, %v179
    %vm182 = vcmp.ge.f32.partialorder %v23, %v179
    %vm183 = vcmp.ge.f32.partialorder %v24, %v179
    %vm184 = vcmp.ge.f32.partialorder %v25, %v179
    %v185 = vsel %vm181, 1, 0
    %v186 = vsel %vm182, 1, 0
    %v187 = vsel %vm183, 1, 0
    %v188 = vsel %vm184, 1, 0
    %v189 = vcvt.s32.f32 %v185
    %v190 = vcvt.s32.f32 %v186
    %v191 = vcvt.s32.f32 %v187
    %v192 = vcvt.s32.f32 %v188
    %194 = vset.pattern.permute.xlu0 0
    %195 = vperm.xlu0 %194, %v27
    %v196 = vpop.permute.xlu0 %195
    %v198 = vunpack.c.l.s4 839922192
    %v199 = vunpack.c.0.s8 %v198
    %v200 = vlaneseq
    %v201 = vshrl.u32 %v200, 7
    %v202 = vsub.s32 %v199, %v201
    %v203 = vrot.slane %v196, %v202
    %vm205 = vcmp.le.f32.partialorder %v22, %v203
    %vm206 = vcmp.le.f32.partialorder %v23, %v203
    %vm207 = vcmp.le.f32.partialorder %v24, %v203
    %vm208 = vcmp.le.f32.partialorder %v25, %v203
    %v209 = vsel %vm205, 1, 0
    %v210 = vsel %vm206, 1, 0
    %v211 = vsel %vm207, 1, 0
    %v212 = vsel %vm208, 1, 0
    %v213 = vcvt.s32.f32 %v209
    %v214 = vcvt.s32.f32 %v210
    %v215 = vcvt.s32.f32 %v211
    %v216 = vcvt.s32.f32 %v212
    %v221 = vcombine.high %v189, %v189
    %v222 = vcombine.high %v190, %v190
    %v223 = vcombine.high %v191, %v191
    %v224 = vcombine.high %v192, %v192
    %v229 = vsel %vm44, %v189, 0.0
    %v230 = vrot.slane %v229, 4
    %v231 = vadd.f32 %v229, %v230
    %v232 = vrot.slane %v231, 2
    %v233 = vadd.f32 %v231, %v232
    %v234 = vrot.slane %v233, 1
    %v235 = vadd.f32 %v233, %v234
    %v236 = vsel %vm44, %v221, 0.0
    %v237 = vrot.slane %v236, 4
    %v238 = vadd.f32 %v236, %v237
    %v239 = vrot.slane %v238, 2
    %v240 = vadd.f32 %v238, %v239
    %v241 = vrot.slane %v240, 1
    %v242 = vadd.f32 %v240, %v241
    %v243 = vsel %vm44, %v190, 0.0
    %v244 = vrot.slane %v243, 4
    %v245 = vadd.f32 %v243, %v244
    %v246 = vrot.slane %v245, 2
    %v247 = vadd.f32 %v245, %v246
    %v248 = vrot.slane %v247, 1
    %v249 = vadd.f32 %v247, %v248
    %v250 = vsel %vm44, %v222, 0.0
    %v251 = vrot.slane %v250, 4
    %v252 = vadd.f32 %v250, %v251
    %v253 = vrot.slane %v252, 2
    %v254 = vadd.f32 %v252, %v253
    %v255 = vrot.slane %v254, 1
    %v256 = vadd.f32 %v254, %v255
    %v257 = vsel %vm44, %v191, 0.0
    %v258 = vrot.slane %v257, 4
    %v259 = vadd.f32 %v257, %v258
    %v260 = vrot.slane %v259, 2
    %v261 = vadd.f32 %v259, %v260
    %v262 = vrot.slane %v261, 1
    %v263 = vadd.f32 %v261, %v262
    %v264 = vsel %vm44, %v223, 0.0
    %v265 = vrot.slane %v264, 4
    %v266 = vadd.f32 %v264, %v265
    %v267 = vrot.slane %v266, 2
    %v268 = vadd.f32 %v266, %v267
    %v269 = vrot.slane %v268, 1
    %v270 = vadd.f32 %v268, %v269
    %v271 = vsel %vm44, %v192, 0.0
    %v272 = vrot.slane %v271, 4
    %v273 = vadd.f32 %v271, %v272
    %v274 = vrot.slane %v273, 2
    %v275 = vadd.f32 %v273, %v274
    %v276 = vrot.slane %v275, 1
    %v277 = vadd.f32 %v275, %v276
    %v278 = vsel %vm58, %v224, 0.0
    %v279 = vrot.slane %v278, 4
    %v280 = vadd.f32 %v278, %v279
    %v281 = vrot.slane %v280, 2
    %v282 = vadd.f32 %v280, %v281
    %v283 = vrot.slane %v282, 1
    %v284 = vadd.f32 %v282, %v283
    %v289 = vcombine.high %v213, %v213
    %v290 = vcombine.high %v214, %v214
    %v291 = vcombine.high %v215, %v215
    %v292 = vcombine.high %v216, %v216
    %v297 = vsel %vm44, %v213, 0.0
    %v298 = vrot.slane %v297, 4
    %v299 = vadd.f32 %v297, %v298
    %v300 = vrot.slane %v299, 2
    %v301 = vadd.f32 %v299, %v300
    %v302 = vrot.slane %v301, 1
    %v303 = vadd.f32 %v301, %v302
    %v304 = vsel %vm44, %v289, 0.0
    %v305 = vrot.slane %v304, 4
    %v306 = vadd.f32 %v304, %v305
    %v307 = vrot.slane %v306, 2
    %v308 = vadd.f32 %v306, %v307
    %v309 = vrot.slane %v308, 1
    %v310 = vadd.f32 %v308, %v309
    %v311 = vsel %vm44, %v214, 0.0
    %v312 = vrot.slane %v311, 4
    %v313 = vadd.f32 %v311, %v312
    %v314 = vrot.slane %v313, 2
    %v315 = vadd.f32 %v313, %v314
    %v316 = vrot.slane %v315, 1
    %v317 = vadd.f32 %v315, %v316
    %v318 = vsel %vm44, %v290, 0.0
    %v319 = vrot.slane %v318, 4
    %v320 = vadd.f32 %v318, %v319
    %v321 = vrot.slane %v320, 2
    %v322 = vadd.f32 %v320, %v321
    %v323 = vrot.slane %v322, 1
    %v324 = vadd.f32 %v322, %v323
    %v325 = vsel %vm44, %v215, 0.0
    %v326 = vrot.slane %v325, 4
    %v327 = vadd.f32 %v325, %v326
    %v328 = vrot.slane %v327, 2
    %v329 = vadd.f32 %v327, %v328
    %v330 = vrot.slane %v329, 1
    %v331 = vadd.f32 %v329, %v330
    %v332 = vsel %vm44, %v291, 0.0
    %v333 = vrot.slane %v332, 4
    %v334 = vadd.f32 %v332, %v333
    %v335 = vrot.slane %v334, 2
    %v336 = vadd.f32 %v334, %v335
    %v337 = vrot.slane %v336, 1
    %v338 = vadd.f32 %v336, %v337
    %v339 = vsel %vm44, %v216, 0.0
    %v340 = vrot.slane %v339, 4
    %v341 = vadd.f32 %v339, %v340
    %v342 = vrot.slane %v341, 2
    %v343 = vadd.f32 %v341, %v342
    %v344 = vrot.slane %v343, 1
    %v345 = vadd.f32 %v343, %v344
    %v346 = vsel %vm58, %v292, 0.0
    %v347 = vrot.slane %v346, 4
    %v348 = vadd.f32 %v346, %v347
    %v349 = vrot.slane %v348, 2
    %v350 = vadd.f32 %v348, %v349
    %v351 = vrot.slane %v350, 1
    %v352 = vadd.f32 %v350, %v351
    %vm353 = vcmp.gt.f32.partialorder %v235, 0.0
    %vm354 = vcmp.gt.f32.partialorder %v242, 0.0
    %vm355 = vcmp.gt.f32.partialorder %v249, 0.0
    %vm356 = vcmp.gt.f32.partialorder %v256, 0.0
    %vm357 = vcmp.gt.f32.partialorder %v263, 0.0
    %vm358 = vcmp.gt.f32.partialorder %v270, 0.0
    %vm359 = vcmp.gt.f32.partialorder %v277, 0.0
    %vm360 = vcmp.gt.f32.partialorder %v284, 0.0
    %v361 = vmul.f32 %v235, 1.442695
    %v362 = vpow.pop %v361
    %v363 = vmul.f32 %v242, 1.442695
    %v364 = vpow.pop %v363
    %v365 = vmul.f32 %v249, 1.442695
    %v366 = vpow.pop %v365
    %v367 = vmul.f32 %v256, 1.442695
    %v368 = vpow.pop %v367
    %v369 = vmul.f32 %v263, 1.442695
    %v370 = vpow.pop %v369
    %v371 = vmul.f32 %v270, 1.442695
    %v372 = vpow.pop %v371
    %v373 = vmul.f32 %v277, 1.442695
    %v374 = vpow.pop %v373
    %v375 = vmul.f32 %v284, 1.442695
    %v376 = vpow.pop %v375
    %v377 = vadd.f32 %v362, 1.0
    %v378 = vadd.f32 %v364, 1.0
    %v379 = vadd.f32 %v366, 1.0
    %v380 = vadd.f32 %v368, 1.0
    %v381 = vadd.f32 %v370, 1.0
    %v382 = vadd.f32 %v372, 1.0
    %v383 = vadd.f32 %v374, 1.0
    %v384 = vadd.f32 %v376, 1.0
    %v385 = vrcp.pop %v377
    %v386 = vrcp.pop %v378
    %v387 = vrcp.pop %v379
    %v388 = vrcp.pop %v380
    %v389 = vrcp.pop %v381
    %v390 = vrcp.pop %v382
    %v391 = vrcp.pop %v383
    %v392 = vrcp.pop %v384
    %v393 = vmul.f32 %v385, 3.85
    %v394 = vmul.f32 %v386, 3.85
    %v395 = vmul.f32 %v387, 3.85
    %v396 = vmul.f32 %v388, 3.85
    %v397 = vmul.f32 %v389, 3.85
    %v398 = vmul.f32 %v390, 3.85
    %v399 = vmul.f32 %v391, 3.85
    %v400 = vmul.f32 %v392, 3.85
    %v401 = vsel %vm353, %v393, 0.0
    %v402 = vsel %vm354, %v394, 0.0
    %v403 = vsel %vm355, %v395, 0.0
    %v404 = vsel %vm356, %v396, 0.0
    %v405 = vsel %vm357, %v397, 0.0
    %v406 = vsel %vm358, %v398, 0.0
    %v407 = vsel %vm359, %v399, 0.0
    %v408 = vsel %vm360, %v400, 0.0
    %vm409 = vcmp.gt.f32.partialorder %v303, 0.0
    %vm410 = vcmp.gt.f32.partialorder %v310, 0.0
    %vm411 = vcmp.gt.f32.partialorder %v317, 0.0
    %vm412 = vcmp.gt.f32.partialorder %v324, 0.0
    %vm413 = vcmp.gt.f32.partialorder %v331, 0.0
    %vm414 = vcmp.gt.f32.partialorder %v338, 0.0
    %vm415 = vcmp.gt.f32.partialorder %v345, 0.0
    %vm416 = vcmp.gt.f32.partialorder %v352, 0.0
    %v417 = vmul.f32 %v303, 1.442695
    %v418 = vpow.pop %v417
    %v419 = vmul.f32 %v310, 1.442695
    %v420 = vpow.pop %v419
    %v421 = vmul.f32 %v317, 1.442695
    %v422 = vpow.pop %v421
    %v423 = vmul.f32 %v324, 1.442695
    %v424 = vpow.pop %v423
    %v425 = vmul.f32 %v331, 1.442695
    %v426 = vpow.pop %v425
    %v427 = vmul.f32 %v338, 1.442695
    %v428 = vpow.pop %v427
    %v429 = vmul.f32 %v345, 1.442695
    %v430 = vpow.pop %v429
    %v431 = vmul.f32 %v352, 1.442695
    %v432 = vpow.pop %v431
    %v433 = vadd.f32 %v418, 1.0
    %v434 = vadd.f32 %v420, 1.0
    %v435 = vadd.f32 %v422, 1.0
    %v436 = vadd.f32 %v424, 1.0
    %v437 = vadd.f32 %v426, 1.0
    %v438 = vadd.f32 %v428, 1.0
    %v439 = vadd.f32 %v430, 1.0
    %v440 = vadd.f32 %v432, 1.0
    %v441 = vrcp.pop %v433
    %v442 = vrcp.pop %v434
    %v443 = vrcp.pop %v435
    %v444 = vrcp.pop %v436
    %v445 = vrcp.pop %v437
    %v446 = vrcp.pop %v438
    %v447 = vrcp.pop %v439
    %v448 = vrcp.pop %v440
    %v449 = vmul.f32 %v441, 3.85
    %v450 = vmul.f32 %v442, 3.85
    %v451 = vmul.f32 %v443, 3.85
    %v452 = vmul.f32 %v444, 3.85
    %v453 = vmul.f32 %v445, 3.85
    %v454 = vmul.f32 %v446, 3.85
    %v455 = vmul.f32 %v447, 3.85
    %v456 = vmul.f32 %v448, 3.85
    %v457 = vsel %vm409, %v449, 0.0
    %v458 = vsel %vm410, %v450, 0.0
    %v459 = vsel %vm411, %v451, 0.0
    %v460 = vsel %vm412, %v452, 0.0
    %v461 = vsel %vm413, %v453, 0.0
    %v462 = vsel %vm414, %v454, 0.0
    %v463 = vsel %vm415, %v455, 0.0
    %v464 = vsel %vm416, %v456, 0.0
    %v473 = vcombine.low %v401, %v402
    %v474 = vcombine.low %v403, %v404
    %v475 = vcombine.low %v405, %v406
    %v476 = vcombine.low %v407, %v408
    %v481 = vmul.f32 %v165, %v473
    %v482 = vmul.f32 %v166, %v474
    %v483 = vmul.f32 %v167, %v475
    %v484 = vmul.f32 %v168, %v476
    %v489 = vcombine.high %v481, %v481
    %v490 = vcombine.high %v482, %v482
    %v491 = vcombine.high %v483, %v483
    %v492 = vcombine.high %v484, %v484
    %v497 = vsel %vm44, %v481, 0.0
    %v498 = vsel %vm44, %v489, 0.0
    %v499 = vadd.f32 %v497, %v498
    %v500 = vsel %vm44, %v482, 0.0
    %v501 = vadd.f32 %v499, %v500
    %v502 = vsel %vm44, %v490, 0.0
    %v503 = vadd.f32 %v501, %v502
    %v504 = vsel %vm44, %v483, 0.0
    %v505 = vadd.f32 %v503, %v504
    %v506 = vsel %vm44, %v491, 0.0
    %v507 = vadd.f32 %v505, %v506
    %v508 = vsel %vm44, %v484, 0.0
    %v509 = vadd.f32 %v507, %v508
    %v510 = vsel %vm58, %v492, 0.0
    %v511 = vadd.f32 %v509, %v510
    %512 = vadd.xlane.f32.xlu0 %v511
    %v513 = vpop.xlane.xlu0 %512
    %v514 = vrot.slane %v513, 4
    %v515 = vadd.f32 %v513, %v514
    %v516 = vrot.slane %v515, 2
    %v517 = vadd.f32 %v515, %v516
    %v518 = vrot.slane %v517, 1
    %v519 = vadd.f32 %v517, %v518
    %s520 = vtos %v519
    %s521 = smul.f32 %s520, 0.00025562372
    %v530 = vcombine.low %v457, %v458
    %v531 = vcombine.low %v459, %v460
    %v532 = vcombine.low %v461, %v462
    %v533 = vcombine.low %v463, %v464
    %v538 = vmul.f32 %v165, %v530
    %v539 = vmul.f32 %v166, %v531
    %v540 = vmul.f32 %v167, %v532
    %v541 = vmul.f32 %v168, %v533
    %v546 = vcombine.high %v538, %v538
    %v547 = vcombine.high %v539, %v539
    %v548 = vcombine.high %v540, %v540
    %v549 = vcombine.high %v541, %v541
    %v554 = vsel %vm44, %v538, 0.0
    %v555 = vsel %vm44, %v546, 0.0
    %v556 = vadd.f32 %v554, %v555
    %v557 = vsel %vm44, %v539, 0.0
    %v558 = vadd.f32 %v556, %v557
    %v559 = vsel %vm44, %v547, 0.0
    %v560 = vadd.f32 %v558, %v559
    %v561 = vsel %vm44, %v540, 0.0
    %v562 = vadd.f32 %v560, %v561
    %v563 = vsel %vm44, %v548, 0.0
    %v564 = vadd.f32 %v562, %v563
    %v565 = vsel %vm44, %v541, 0.0
    %v566 = vadd.f32 %v564, %v565
    %v567 = vsel %vm58, %v549, 0.0
    %v568 = vadd.f32 %v566, %v567
    %569 = vadd.xlane.f32.xlu0 %v568
    %v570 = vpop.xlane.xlu0 %569
    %v571 = vrot.slane %v570, 4
    %v572 = vadd.f32 %v570, %v571
    %v573 = vrot.slane %v572, 2
    %v574 = vadd.f32 %v572, %v573
    %v575 = vrot.slane %v574, 1
    %v576 = vadd.f32 %v574, %v575
    %s577 = vtos %v576
    %s578 = smul.f32 %s577, 0.00025562372
    %s579 = sadd.f32 %s521, %s578
    %s580 = smul.f32 %s579, 0.5
    %s581 = sadd.f32 %s160, %s580
    %v582 = vstv %s581
    %vm583 = vcmask 0
    %584 = vst.msk [vmem:[#allocation2] sm:$0x1] %vm583, %v582
    // Predicated region
    $region18: #{hybrid_cosine_mse_batchweighted_loss.1} parent=1 // pred_check
      _
    $region19: #{hybrid_cosine_mse_batchweighted_loss.1} parent=1 // pred_check_branch
      %586 = sbr.rel (0) target = $region21
    $region20: #{hybrid_cosine_mse_batchweighted_loss.1} parent=1 // pred_region
      %s588 = ssub.s32 16, 16
      %589 = vsyncadd [#allocation3], %s588
      %s591 = sshll.u32 [#allocation2], 4
      %s592 = int_to_ptr.vmem [resolvable:$true] %s591
      %594 = dma.vmem_to_hbm [thread:$0]  %s592, 16, %s4, [#allocation3]
    $region21: #{hybrid_cosine_mse_batchweighted_loss.1} parent=1 // pred_fallthru
      _
    // Predicated region
    $region22: #{hybrid_cosine_mse_batchweighted_loss.1} parent=1 // pred_check
      _
    $region23: #{hybrid_cosine_mse_batchweighted_loss.1} parent=1 // pred_check_branch
      %596 = sbr.rel (0) target = $region25
    $region24: #{hybrid_cosine_mse_batchweighted_loss.1} parent=1 // pred_region
      %597 = dma.done [#allocation3], 16
    $region25: #{hybrid_cosine_mse_batchweighted_loss.1} parent=1 // pred_fallthru
      _
    %598 = vsyncpa [#allocation3], 1

</llo_original>
